<compile_context>
chip_gen: v7x
topology: tpu7x:2x2x1
jax: 0.10.0
libtpu: 0.0.40
codegen_flags: <defaults>
</compile_context>

<pallas_src>
import jax
import jax.numpy as jnp
from jax.experimental import pallas as pl
from jax.experimental.pallas import tpu as pltpu


def _log_sigmoid(x):
    # numerically stable logsigmoid(x) = min(x, 0) - log1p(exp(-|x|))
    return jnp.minimum(x, 0.0) - jnp.log1p(jnp.exp(-jnp.abs(x)))


def _mane_loss_kernel(w_ref, ctx_ref, node_ref, out_ref):
    """One grid step == one loss term.

    w_ref   : SMEM (T,)  f32       folded per-term weights (sign/scales included)
    ctx_ref : VMEM (1, K+1, B, D)  slot 0 = positive context, slots 1..K = negatives
    node_ref: VMEM (1, B, D)       center-node embeddings
    out_ref : SMEM (1, 1) f32      scalar loss accumulator (revisited across grid)
    """
    t = pl.program_id(0)

    @pl.when(t == 0)
    def _init():
        out_ref[0, 0] = 0.0

    # Upcast right after load: inputs may be bf16 (half the HBM bytes); all
    # arithmetic is f32 so this is also correct on v5e (no bf16 VPU/EUP ops).
    ctx = ctx_ref[0].astype(jnp.float32)          # (K+1, B, D)
    u = node_ref[0].astype(jnp.float32)           # (B, D)

    # Fused pos+neg scores: s[k, b] = <ctx[k, b, :], u[b, :]>.
    # Broadcasting u over the leading slot axis is free (untiled axis).
    s = jnp.sum(ctx * u[None, :, :], axis=-1)     # (K+1, B)

    # Reference applies .neg() to the negative-sample embeddings; apply that
    # sign on the small score tensor instead of the big context tensor.
    slot = jax.lax.broadcasted_iota(jnp.int32, s.shape, 0)
    s = jnp.where(slot == 0, s, -s)

    # One logsigmoid + one full reduction per term, weighted from SMEM.
    out_ref[0, 0] += w_ref[t] * jnp.sum(_log_sigmoid(s))


def mane_loss_pallas(ctx, node_emb, weights):
    """ctx: (T, K+1, B, D), node_emb: (T, B, D), weights: (T,) f32 -> scalar loss."""
    T, Kp1, B, D = ctx.shape
    out = pl.pallas_call(
        _mane_loss_kernel,
        out_shape=jax.ShapeDtypeStruct((1, 1), jnp.float32),
        grid=(T,),
        in_specs=[
            pl.BlockSpec(memory_space=pltpu.MemorySpace.SMEM),       # weights (T,)
            pl.BlockSpec((1, Kp1, B, D), lambda t: (t, 0, 0, 0)),    # ctx block
            pl.BlockSpec((1, B, D), lambda t: (t, 0, 0)),            # node block
        ],
        out_specs=pl.BlockSpec(memory_space=pltpu.MemorySpace.SMEM),
        compiler_params=pltpu.CompilerParams(
            # the single grid axis is a reduction into the scalar accumulator
            dimension_semantics=("arbitrary",),
            # one double-buffered (K+1, B, D) block per step: comfortably under
            # v7x's 32 MiB scoped / 64 MiB physical VMEM even at production B.
            vmem_limit_bytes=32 * 1024 * 1024,
        ),
    )(weights, ctx, node_emb)
    return out[0, 0]


def mane_attention_forward(node_weights, neigh_weights, embed_freq,
                           count, shuffle_indices_nets, nodes_idx_nets,
                           neigh_idx_nets, hyp1, hyp2,
                           batch_size, negative_sampling_size, key,
                           kernel_input_dtype=jnp.bfloat16):
    """Glue mirroring MANEAttention.forward: embedding gathers and
    multinomial(embed_freq) negative sampling; the loss math runs in the
    Pallas kernel."""
    V = len(node_weights)
    D = node_weights[0].shape[1]
    B = batch_size
    K = negative_sampling_size
    M = V * (V - 1)
    logits = jnp.log(embed_freq)       # torch.multinomial(embed_freq, replacement=True)

    def batch_ids(i):
        sel = shuffle_indices_nets[i][count:count + B]
        return nodes_idx_nets[i][sel], neigh_idx_nets[i][sel]

    keys = list(jax.random.split(key, V + 2 * M))
    key_it = iter(keys)

    def sample_neg(table):
        ids = jax.random.categorical(next(key_it), logits, shape=(K * B,))
        return table[ids].reshape(K, B, D)        # K iid negative slots per row

    ctx_list, node_list = [], []

    def add_term(node_e, pos_e, neg_e):
        # fuse the positive context as slot 0 of a (K+1, B, D) context block
        ctx_list.append(jnp.concatenate([pos_e[None, :, :], neg_e], axis=0))
        node_list.append(node_e)

    # cost1: (neigh_emb_i[neigh_idx_i], node_emb_i[node_idx_i])
    for i in range(V):
        nids, gids = batch_ids(i)
        add_term(node_weights[i][nids], neigh_weights[i][gids],
                 sample_neg(neigh_weights[i]))

    # cost2: cross-view (node_emb_j[node_idx_i], node_emb_i[node_idx_i]), i != j
    for j in range(V):
        for i in range(V):
            if i == j:
                continue
            nids, _ = batch_ids(i)
            add_term(node_weights[i][nids], node_weights[j][nids],
                     sample_neg(node_weights[j]))

    # cost3: cross-view (neigh_emb_j[neigh_idx_i], node_emb_i[node_idx_i]), i != j
    for j in range(V):
        for i in range(V):
            if i == j:
                continue
            nids, gids = batch_ids(i)
            add_term(node_weights[i][nids], neigh_weights[j][gids],
                     sample_neg(neigh_weights[j]))

    # TODO(synk): at production sizes, gather these rows inside the kernel
    # (embedding tables via memory_space=pl.ANY + scalar-prefetched indices +
    # manual make_async_copy) instead of materializing the stacked tensors.
    ctx = jnp.stack(ctx_list).astype(kernel_input_dtype)          # (T, K+1, B, D)
    node_emb = jnp.stack(node_list).astype(kernel_input_dtype)    # (T, B, D)

    # Fold every scalar factor of the reference loss into one weight per term:
    #   loss = -( mean(cost1) + hyp1*mean(cost2_raw) + hyp2*mean(cost3_raw) ) / 3
    # with each raw term = (1/B) * sum_{b,slot} logsigmoid(score).
    weights = jnp.concatenate([
        jnp.full((V,), -1.0 / (3.0 * V * B), dtype=jnp.float32),   # cost1 terms
        jnp.full((M,), -hyp1 / (3.0 * M * B), dtype=jnp.float32),  # cost2 terms
        jnp.full((M,), -hyp2 / (3.0 * M * B), dtype=jnp.float32),  # cost3 terms
    ])

    return mane_loss_pallas(ctx, node_emb, weights)


if __name__ == "__main__":
    # small shapes consistent with the module
    V = 3          # params.nviews
    N = 64         # len_common_nodes
    D = 32         # params.dimensions (embedding dim)
    B = 8          # batch_size
    K = 10         # negative_sampling_size
    n_pairs = 40   # number of (node, neighbor) training pairs per view
    count = 0
    hyp1, hyp2 = 0.1, 0.01

    key = jax.random.PRNGKey(0)
    ks = jax.random.split(key, 20)

    # deterministic "checkpoint": nn.Embedding weights ~ N(0, 1)
    node_weights = [jax.random.normal(ks[i], (N, D), jnp.float32) for i in range(V)]
    neigh_weights = [jax.random.normal(ks[V + i], (N, D), jnp.float32) for i in range(V)]
    embed_freq = jax.random.uniform(ks[2 * V], (N,), minval=0.1, maxval=1.0)

    nodes_idx_nets = [jax.random.randint(ks[7 + i], (n_pairs,), 0, N, dtype=jnp.int32)
                      for i in range(V)]
    neigh_idx_nets = [jax.random.randint(ks[10 + i], (n_pairs,), 0, N, dtype=jnp.int32)
                      for i in range(V)]
    shuffle_indices_nets = [jax.random.permutation(ks[13 + i], n_pairs)
                            for i in range(V)]
    neg_key = ks[16]

    loss = mane_attention_forward(node_weights, neigh_weights, embed_freq,
                                  count, shuffle_indices_nets, nodes_idx_nets,
                                  neigh_idx_nets, hyp1, hyp2, B, K, neg_key)
    loss = jax.block_until_ready(loss)
    assert jnp.isfinite(loss), loss
    print("KERNEL_OK")
</pallas_src>

<mosaic_0001>
module attributes {stable_mosaic.version = 11 : i64} {
  func.func @_mane_loss_kernel(%arg0: i32, %arg1: memref<15xf32, #tpu.memory_space<smem>>, %arg2: memref<1x11x8x32xbf16, #tpu.memory_space<vmem>>, %arg3: memref<1x8x32xbf16, #tpu.memory_space<vmem>>, %arg4: memref<1x1xf32, #tpu.memory_space<smem>>) attributes {dimension_semantics = [#tpu.dimension_semantics<arbitrary>], iteration_bounds = array<i64: 15>, scalar_prefetch = 0 : i64, scratch_operands = 0 : i64, tpu.core_type = #tpu.core_type<tc>, window_params = [{transform_indices = @transform_0, window_bounds = array<i64: 15>}, {transform_indices = @transform_1, window_bounds = array<i64: 1, 11, 8, 32>}, {transform_indices = @transform_2, window_bounds = array<i64: 1, 8, 32>}, {transform_indices = @transform_3, window_bounds = array<i64: 1, 1>}]} {
    %c0_i32 = arith.constant 0 : i32
    %0 = arith.cmpi eq, %arg0, %c0_i32 : i32
    %1 = arith.extui %0 : i1 to i32
    %c0_i32_0 = arith.constant 0 : i32
    %2 = arith.cmpi ne, %1, %c0_i32_0 : i32
    scf.if %2 {
      %cst_16 = arith.constant 0.000000e+00 : f32
      %c0_17 = arith.constant 0 : index
      %c0_18 = arith.constant 0 : index
      %37 = memref.load %arg4[%c0_17, %c0_18] : memref<1x1xf32, #tpu.memory_space<smem>>
      memref.store %cst_16, %arg4[%c0_17, %c0_18] : memref<1x1xf32, #tpu.memory_space<smem>>
    } else {
    }
    %c0 = arith.constant 0 : index
    %c0_1 = arith.constant 0 : index
    %c0_2 = arith.constant 0 : index
    %c0_3 = arith.constant 0 : index
    %3 = vector.load %arg2[%c0, %c0_1, %c0_2, %c0_3] : memref<1x11x8x32xbf16, #tpu.memory_space<vmem>>, vector<1x11x8x32xbf16>
    %4 = vector.shape_cast %3 : vector<1x11x8x32xbf16> to vector<11x8x32xbf16>
    %5 = arith.extf %4 : vector<11x8x32xbf16> to vector<11x8x32xf32>
    %c0_4 = arith.constant 0 : index
    %c0_5 = arith.constant 0 : index
    %c0_6 = arith.constant 0 : index
    %6 = vector.load %arg3[%c0_4, %c0_5, %c0_6] : memref<1x8x32xbf16, #tpu.memory_space<vmem>>, vector<1x8x32xbf16>
    %7 = vector.shape_cast %6 : vector<1x8x32xbf16> to vector<8x32xbf16>
    %8 = arith.extf %7 : vector<8x32xbf16> to vector<8x32xf32>
    %9 = vector.shape_cast %8 : vector<8x32xf32> to vector<1x8x32xf32>
    %10 = vector.broadcast %9 : vector<1x8x32xf32> to vector<11x8x32xf32>
    %11 = arith.mulf %5, %10 : vector<11x8x32xf32>
    %cst = arith.constant dense<0.000000e+00> : vector<11x8xf32>
    %12 = vector.multi_reduction <add>, %11, %cst [2] : vector<11x8x32xf32> to vector<11x8xf32>
    %13 = tpu.iota {dimensions = array<i32: 0>} : vector<11x8xi32>
    %c0_i32_7 = arith.constant 0 : i32
    %14 = vector.broadcast %c0_i32_7 : i32 to vector<11x8xi32>
    %15 = arith.cmpi eq, %13, %14 : vector<11x8xi32>
    %cst_8 = arith.constant 0.000000e+00 : f32
    %16 = vector.broadcast %cst_8 : f32 to vector<11x8xf32>
    %17 = arith.subf %16, %12 : vector<11x8xf32>
    %18 = arith.select %15, %12, %17 : vector<11x8xi1>, vector<11x8xf32>
    %c0_9 = arith.constant 0 : index
    %c0_10 = arith.constant 0 : index
    %19 = memref.load %arg4[%c0_9, %c0_10] : memref<1x1xf32, #tpu.memory_space<smem>>
    %20 = arith.index_cast %arg0 : i32 to index
    %21 = memref.load %arg1[%20] : memref<15xf32, #tpu.memory_space<smem>>
    %cst_11 = arith.constant 0.000000e+00 : f32
    %22 = vector.broadcast %cst_11 : f32 to vector<11x8xf32>
    %23 = arith.minimumf %18, %22 : vector<11x8xf32>
    %24 = math.absf %18 : vector<11x8xf32>
    %cst_12 = arith.constant 0.000000e+00 : f32
    %25 = vector.broadcast %cst_12 : f32 to vector<11x8xf32>
    %26 = arith.subf %25, %24 : vector<11x8xf32>
    %27 = math.exp %26 : vector<11x8xf32>
    %28 = math.log1p %27 : vector<11x8xf32>
    %29 = arith.subf %23, %28 : vector<11x8xf32>
    %30 = vector.shape_cast %29 : vector<11x8xf32> to vector<1x11x8xf32>
    %cst_13 = arith.constant dense<0.000000e+00> : vector<1xf32>
    %31 = vector.multi_reduction <add>, %30, %cst_13 [1, 2] : vector<1x11x8xf32> to vector<1xf32>
    %32 = vector.shape_cast %31 : vector<1xf32> to vector<1x1x1xf32>
    %33 = vector.extract %32[0, 0, 0] : f32 from vector<1x1x1xf32>
    %34 = arith.mulf %21, %33 : f32
    %35 = arith.addf %19, %34 : f32
    %c0_14 = arith.constant 0 : index
    %c0_15 = arith.constant 0 : index
    %36 = memref.load %arg4[%c0_14, %c0_15] : memref<1x1xf32, #tpu.memory_space<smem>>
    memref.store %35, %arg4[%c0_14, %c0_15] : memref<1x1xf32, #tpu.memory_space<smem>>
    return
  }
  func.func @transform_0(%arg0: i32) -> i32 {
    %c0_i32 = arith.constant 0 : i32
    %c0_i32_0 = arith.constant 0 : i32
    return %c0_i32 : i32
  }
  func.func @transform_1(%arg0: i32) -> (i32, i32, i32, i32) {
    %c0_i32 = arith.constant 0 : i32
    %c0_i32_0 = arith.constant 0 : i32
    %c0_i32_1 = arith.constant 0 : i32
    %c0_i32_2 = arith.constant 0 : i32
    return %arg0, %c0_i32, %c0_i32_0, %c0_i32_1 : i32, i32, i32, i32
  }
  func.func @transform_2(%arg0: i32) -> (i32, i32, i32) {
    %c0_i32 = arith.constant 0 : i32
    %c0_i32_0 = arith.constant 0 : i32
    %c0_i32_1 = arith.constant 0 : i32
    return %arg0, %c0_i32, %c0_i32_0 : i32, i32, i32
  }
  func.func @transform_3(%arg0: i32) -> (i32, i32) {
    %c0_i32 = arith.constant 0 : i32
    %c0_i32_0 = arith.constant 0 : i32
    %c0_i32_1 = arith.constant 0 : i32
    return %c0_i32, %c0_i32_0 : i32, i32
  }
}

</mosaic_0001>

<llo_original>
// kernel: tpu_custom_call.1
$region0: #{tpu_custom_call.1}
  #allocation0 [shape = 'u32[]', space=smem, size = 0x4, offset = 0x4, fixed_abs, tag = 'smem constant byte address 0x4 - core index']
  #allocation1 [shape = 'u32[144,128]{1,0:T(1,128)}', space=vmem, size = 0x12000, scoped, tag = 'internal scratch']
  %s0 = inlined_call_operand.hbm [shape: f32[15], index: 0, kind: input, shape index: {}]
  %s1 = inlined_call_operand.hbm [shape: bf16[15,11,8,32], index: 1, kind: input, shape index: {}]
  %s2 = inlined_call_operand.hbm [shape: bf16[15,8,32], index: 2, kind: input, shape index: {}]
  %s3 = inlined_call_operand.hbm [shape: f32[1,1], index: 3, kind: output, shape index: {}]
  %s4 = sld [smem:[#allocation0]]
  $region61: #{tpu_custom_call.1} parent=0
    _
  %s6 = ssub.s32 1, %s4
  %s7 = scalar_select 0, %s6, %s4
  $region1: #{tpu_custom_call.1} parent=0
    #allocation2 [shape = 'u8[512]{0}', space=smem, size = 0x200, scoped, tag = 'input window, operand 0, single buffered']
    #allocation3 [shape = 's32[2]{0}', space=sflag, size = 0x8, scoped, tag = 'scoped memory for tpu_custom_call.1']
    #allocation4 [shape = 's32[2]{0}', space=sflag, size = 0x8, scoped, tag = 'scoped memory for tpu_custom_call.1']
    #allocation5 [shape = 's32[2]{0}', space=sflag, size = 0x8, scoped, tag = 'scoped memory for tpu_custom_call.1']
    #allocation6 [shape = 'u8[45056]{0}', space=vmem, size = 0xb000, scoped, tag = 'input window, operand 1']
    #allocation7 [shape = 'u8[4096]{0}', space=vmem, size = 0x1000, scoped, tag = 'input window, operand 2']
    #allocation8 [shape = 's32[2]{0}', space=sflag, size = 0x8, scoped, tag = 'scoped memory for tpu_custom_call.1']
    #allocation9 [shape = 'u8[512]{0}', space=smem, size = 0x200, scoped, tag = 'output window, operand 0, single buffered']
    %8 = vsyncpa [#allocation4], 0
    %9 = vsyncpa [#allocation3], 0
    %s10 = scalar_lea.sflag [#allocation3], 1
    %11 = vsyncpa %s10, 0
    %12 = vsyncpa [#allocation8], 0
    %s13 = scalar_lea.sflag [#allocation8], 1
    %14 = vsyncpa %s13, 0
    %15 = vsyncpa [#allocation5], 0
    loop: start=0, step=1, limit=17
    $region2: #{tpu_custom_call.1} parent=1 // loop_pre_header
      _
    $region3: #{tpu_custom_call.1} parent=1 // loop_header
      %s17 = sphi 0, %s21
      %p18 = scmp.ge.s32.totalorder %s17, 17
      %s25 = sphi 0, %s25
      %s27 = sphi 0, %s25
      %s28 = sphi 0, %s27
      %s42 = sphi 0, %s28
      %s48 = sphi 0, %s50
      %s51 = sphi 0, %s48
      %s52 = sphi 0, %s51
      %s68 = sphi 0, %s52
      %s74 = sphi 0, %s76
      %s77 = sphi 0, %s74
      %s78 = sphi 0, %s77
      %s94 = sphi 0, %s78
      %s98 = sphi 0, %s98
      %s100 = sphi 0, %s98
      %s101 = sphi 0, %s100
      %s115 = sphi 0, %s101
    $region4: #{tpu_custom_call.1} parent=1 // loop_header_branch
      %20 = sbr.rel (%p18) target = $region8
    $region5: #{tpu_custom_call.1} parent=1 // loop_body
      %s22 = ssub.s32 %s17, 1
      %s23 = ssub.s32 %s17, 2
      %s24 = sadd.s32 %s17, 1
      %s26 = sadd.s32 %s25, 1
      %p29 = scmp.eq.s32.totalorder %s17, 14
      %p30 = scmp.ne.s32.totalorder %s25, %s27
      %p31 = scmp.eq.s32.totalorder %s17, 0
      %p32 = por %p30, %p31
      %p33 = scmp.ne.s32.totalorder %s25, %s27
      %p34 = scmp.eq.s32.totalorder %s22, 14
      %p35 = por %p33, %p34
      %p36 = scmp.ne.s32.totalorder %s27, %s28
      %p37 = scmp.eq.s32.totalorder %s22, 0
      %p38 = por %p36, %p37
      %p39 = scmp.ne.s32.totalorder %s27, %s28
      %p40 = scmp.eq.s32.totalorder %s23, 14
      %p41 = por %p39, %p40
      %p43 = scmp.ne.s32.totalorder %s28, %s42
      %p44 = scmp.eq.s32.totalorder %s23, 0
      %p45 = por %p43, %p44
      %s46 = ssub.s32 %s17, %s24
      %p47 = scmp.eq.s32.totalorder %s46, 0
      %s49 = sadd.s32 %s48, 1
      %s50 = scalar_select %p47, %s48, %s49
      %p53 = pneg %p47
      %p54 = scmp.eq.s32.totalorder %s17, 14
      %p55 = por %p53, %p54
      %p56 = scmp.ne.s32.totalorder %s48, %s51
      %p57 = scmp.eq.s32.totalorder %s17, 0
      %p58 = por %p56, %p57
      %p59 = scmp.ne.s32.totalorder %s48, %s51
      %p60 = scmp.eq.s32.totalorder %s22, 14
      %p61 = por %p59, %p60
      %p62 = scmp.ne.s32.totalorder %s51, %s52
      %p63 = scmp.eq.s32.totalorder %s22, 0
      %p64 = por %p62, %p63
      %p65 = scmp.ne.s32.totalorder %s51, %s52
      %p66 = scmp.eq.s32.totalorder %s23, 14
      %p67 = por %p65, %p66
      %p69 = scmp.ne.s32.totalorder %s52, %s68
      %p70 = scmp.eq.s32.totalorder %s23, 0
      %p71 = por %p69, %p70
      %s72 = ssub.s32 %s17, %s24
      %p73 = scmp.eq.s32.totalorder %s72, 0
      %s75 = sadd.s32 %s74, 1
      %s76 = scalar_select %p73, %s74, %s75
      %p79 = pneg %p73
      %p80 = scmp.eq.s32.totalorder %s17, 14
      %p81 = por %p79, %p80
      %p82 = scmp.ne.s32.totalorder %s74, %s77
      %p83 = scmp.eq.s32.totalorder %s17, 0
      %p84 = por %p82, %p83
      %p85 = scmp.ne.s32.totalorder %s74, %s77
      %p86 = scmp.eq.s32.totalorder %s22, 14
      %p87 = por %p85, %p86
      %p88 = scmp.ne.s32.totalorder %s77, %s78
      %p89 = scmp.eq.s32.totalorder %s22, 0
      %p90 = por %p88, %p89
      %p91 = scmp.ne.s32.totalorder %s77, %s78
      %p92 = scmp.eq.s32.totalorder %s23, 14
      %p93 = por %p91, %p92
      %p95 = scmp.ne.s32.totalorder %s78, %s94
      %p96 = scmp.eq.s32.totalorder %s23, 0
      %p97 = por %p95, %p96
      %s99 = sadd.s32 %s98, 1
      %p102 = scmp.eq.s32.totalorder %s17, 14
      %p103 = scmp.ne.s32.totalorder %s98, %s100
      %p104 = scmp.eq.s32.totalorder %s17, 0
      %p105 = por %p103, %p104
      %p106 = scmp.ne.s32.totalorder %s98, %s100
      %p107 = scmp.eq.s32.totalorder %s22, 14
      %p108 = por %p106, %p107
      %p109 = scmp.ne.s32.totalorder %s100, %s101
      %p110 = scmp.eq.s32.totalorder %s22, 0
      %p111 = por %p109, %p110
      %p112 = scmp.ne.s32.totalorder %s100, %s101
      %p113 = scmp.eq.s32.totalorder %s23, 14
      %p114 = por %p112, %p113
      %p116 = scmp.ne.s32.totalorder %s101, %s115
      %p117 = scmp.eq.s32.totalorder %s23, 0
      %p118 = por %p116, %p117
      %p119 = scmp.le.s32.totalorder 1, %s17
      %p120 = scmp.lt.s32.totalorder %s17, 16
      %p121 = pnand %p119, %p120
      %p122 = pneg %p121
      // Predicated region
      $region9: #{tpu_custom_call.1} parent=5 // pred_check
        _
      $region10: #{tpu_custom_call.1} parent=5 // pred_check_branch
        %124 = sbr.rel (%p121) target = $region12
      $region11: #{tpu_custom_call.1} parent=5 // pred_region
        %s125 = ssub.s32 %s17, 1
        // Predicated region
        $region13: #{tpu_custom_call.1} parent=11 // pred_check
          %p126 = pneg %p38
        $region14: #{tpu_custom_call.1} parent=11 // pred_check_branch
          %128 = sbr.rel (%p126) target = $region16
        $region15: #{tpu_custom_call.1} parent=11 // pred_region
          %s130 = ssub.s32 16, 16
          %131 = vsyncadd [#allocation4], %s130
          %134 = dma.hbm_to_smem %s0, 16, [#allocation2], [#allocation4]
        $region16: #{tpu_custom_call.1} parent=11 // pred_fallthru
          _
      $region12: #{tpu_custom_call.1} parent=5 // pred_fallthru
        _
      %p135 = scmp.lt.s32.totalorder %s17, 15
      // Predicated region
      $region17: #{tpu_custom_call.1} parent=5 // pred_check
        %p136 = pneg %p135
      $region18: #{tpu_custom_call.1} parent=5 // pred_check_branch
        %138 = sbr.rel (%p136) target = $region20
      $region19: #{tpu_custom_call.1} parent=5 // pred_region
        // Predicated region
        $region21: #{tpu_custom_call.1} parent=19 // pred_check
          %p139 = pneg %p58
        $region22: #{tpu_custom_call.1} parent=19 // pred_check_branch
          %141 = sbr.rel (%p139) target = $region24
        $region23: #{tpu_custom_call.1} parent=19 // pred_region
          %s142 = sand.u32 %s48, 1
          %s143 = scalar_lea.sflag [#allocation3], %s142
          %s144 = sand.u32 %s48, 1
          %s145 = smul.addr %s144, 44
          %s146 = scalar_lea.vmem [#allocation6], %s145
          %s148 = ssub.s32 704, 704
          %149 = vsyncadd %s143, %s148
          %s150 = smul.addr %s17, 11
          %s151 = smul.addr %s150, 64
          %s152 = scalar_lea.hbm %s1, %s151
          %s153 = sshll.u32 %s146, 4
          %s154 = int_to_ptr.vmem [resolvable:$true] %s153
          %159 = dma.hbm_to_vmem [thread:$0]  %s152, 704, %s154, %s143, 64, 64, 4
        $region24: #{tpu_custom_call.1} parent=19 // pred_fallthru
          _
        // Predicated region
        $region25: #{tpu_custom_call.1} parent=19 // pred_check
          %p160 = pneg %p84
        $region26: #{tpu_custom_call.1} parent=19 // pred_check_branch
          %162 = sbr.rel (%p160) target = $region28
        $region27: #{tpu_custom_call.1} parent=19 // pred_region
          %s163 = sand.u32 %s74, 1
          %s164 = scalar_lea.sflag [#allocation8], %s163
          %s165 = sand.u32 %s74, 1
          %s166 = smul.addr %s165, 4
          %s167 = scalar_lea.vmem [#allocation7], %s166
          %s169 = ssub.s32 64, 64
          %170 = vsyncadd %s164, %s169
          %s171 = smul.addr %s17, 64
          %s172 = scalar_lea.hbm %s2, %s171
          %s174 = sshll.u32 %s167, 4
          %s175 = int_to_ptr.vmem [resolvable:$true] %s174
          %177 = dma.hbm_to_vmem [thread:$0]  %s172, 64, %s175, %s164
        $region28: #{tpu_custom_call.1} parent=19 // pred_fallthru
          _
      $region20: #{tpu_custom_call.1} parent=5 // pred_fallthru
        _
      %p178 = scmp.le.s32.totalorder 1, %s17
      %p179 = scmp.lt.s32.totalorder %s17, 16
      %p180 = pnand %p178, %p179
      %p181 = pneg %p180
      // Predicated region
      $region29: #{tpu_custom_call.1} parent=5 // pred_check
        _
      $region30: #{tpu_custom_call.1} parent=5 // pred_check_branch
        %183 = sbr.rel (%p180) target = $region32
      $region31: #{tpu_custom_call.1} parent=5 // pred_region
        %s184 = ssub.s32 %s17, 1
        // Predicated region
        $region33: #{tpu_custom_call.1} parent=31 // pred_check
          %p185 = pneg %p38
        $region34: #{tpu_custom_call.1} parent=31 // pred_check_branch
          %187 = sbr.rel (%p185) target = $region36
        $region35: #{tpu_custom_call.1} parent=31 // pred_region
          %188 = dma.done [#allocation4], 16
        $region36: #{tpu_custom_call.1} parent=31 // pred_fallthru
          _
        %s189 = sand.u32 %s51, 1
        %s190 = scalar_lea.sflag [#allocation3], %s189
        %s191 = sand.u32 %s51, 1
        %s192 = smul.addr %s191, 44
        %s193 = scalar_lea.vmem [#allocation6], %s192
        // Predicated region
        $region37: #{tpu_custom_call.1} parent=31 // pred_check
          %p194 = pneg %p64
        $region38: #{tpu_custom_call.1} parent=31 // pred_check_branch
          %196 = sbr.rel (%p194) target = $region40
        $region39: #{tpu_custom_call.1} parent=31 // pred_region
          %197 = dma.done %s190, 704
        $region40: #{tpu_custom_call.1} parent=31 // pred_fallthru
          _
        %s198 = sand.u32 %s77, 1
        %s199 = scalar_lea.sflag [#allocation8], %s198
        %s200 = sand.u32 %s77, 1
        %s201 = smul.addr %s200, 4
        %s202 = scalar_lea.vmem [#allocation7], %s201
        // Predicated region
        $region41: #{tpu_custom_call.1} parent=31 // pred_check
          %p203 = pneg %p90
        $region42: #{tpu_custom_call.1} parent=31 // pred_check_branch
          %205 = sbr.rel (%p203) target = $region44
        $region43: #{tpu_custom_call.1} parent=31 // pred_region
          %206 = dma.done %s199, 64
        $region44: #{tpu_custom_call.1} parent=31 // pred_fallthru
          _
        %207 = sfence
        %p208 = pneg %p38
        %p209 = pneg %p35
        %s210 = sand.u32 %s51, 1
        %s211 = scalar_lea.sflag [#allocation3], %s210
        %s212 = sand.u32 %s51, 1
        %s213 = smul.addr %s212, 44
        %s214 = scalar_lea.vmem [#allocation6], %s213
        %p215 = pneg %p64
        %p216 = pneg %p61
        %s217 = sand.u32 %s77, 1
        %s218 = scalar_lea.sflag [#allocation8], %s217
        %s219 = sand.u32 %s77, 1
        %s220 = smul.addr %s219, 4
        %s221 = scalar_lea.vmem [#allocation7], %s220
        %p222 = pneg %p90
        %p223 = pneg %p87
        %p224 = pneg %p111
        %p225 = pneg %p108
        %p226 = scmp.eq.s32.totalorder %s22, 0
        // Predicated region
        $region45: #{tpu_custom_call.1} parent=31 // pred_check
          %p227 = pneg %p226
        $region46: #{tpu_custom_call.1} parent=31 // pred_check_branch
          %229 = sbr.rel (%p227) target = $region48
        $region47: #{tpu_custom_call.1} parent=31 // pred_region
          %s230 = scalar_lea.smem [#allocation9], 0
          %231 = sst [smem:[%s230]] 0.0
        $region48: #{tpu_custom_call.1} parent=31 // pred_fallthru
          _
        %v232 = vld [vmem:[%s193] sm:$0xf]
        %v233 = vld [vmem:[%s193 + $0x4] sm:$0xf]
        %v234 = vld [vmem:[%s193 + $0x8] sm:$0xf]
        %v235 = vld [vmem:[%s193 + $0xc] sm:$0xf]
        %v236 = vld [vmem:[%s193 + $0x10] sm:$0xf]
        %v237 = vld [vmem:[%s193 + $0x14] sm:$0xf]
        %v238 = vld [vmem:[%s193 + $0x18] sm:$0xf]
        %v239 = vld [vmem:[%s193 + $0x1c] sm:$0xf]
        %v240 = vld [vmem:[%s193 + $0x20] sm:$0xf]
        %v241 = vld [vmem:[%s193 + $0x24] sm:$0xf]
        %v242 = vld [vmem:[%s193 + $0x28] sm:$0xf]
        %v243 = vunpack.c.l.bf16 %v232
        %v244 = vunpack.c.l.bf16 %v233
        %v245 = vunpack.c.l.bf16 %v234
        %v246 = vunpack.c.l.bf16 %v235
        %v247 = vunpack.c.l.bf16 %v236
        %v248 = vunpack.c.l.bf16 %v237
        %v249 = vunpack.c.l.bf16 %v238
        %v250 = vunpack.c.l.bf16 %v239
        %v251 = vunpack.c.l.bf16 %v240
        %v252 = vunpack.c.l.bf16 %v241
        %v253 = vunpack.c.l.bf16 %v242
        %v254 = vld [vmem:[%s202] sm:$0xf]
        %v255 = vunpack.c.l.bf16 %v254
        %v256 = vmul.f32 %v243, %v255
        %v257 = vmul.f32 %v244, %v255
        %v258 = vmul.f32 %v245, %v255
        %v259 = vmul.f32 %v246, %v255
        %v260 = vmul.f32 %v247, %v255
        %v261 = vmul.f32 %v248, %v255
        %v262 = vmul.f32 %v249, %v255
        %v263 = vmul.f32 %v250, %v255
        %v264 = vmul.f32 %v251, %v255
        %v265 = vmul.f32 %v252, %v255
        %v266 = vmul.f32 %v253, %v255
        %vm267 = vcmask 261120
        %v268 = vsel %vm267, %v256, 0.0
        %269 = vadd.xlane.f32.xlu0 %v268
        %v270 = vpop.xlane.xlu0 %269
        %v271 = vsel %vm267, %v257, 0.0
        %272 = vadd.xlane.f32.xlu0 %v271
        %v273 = vpop.xlane.xlu0 %272
        %v274 = vsel %vm267, %v258, 0.0
        %275 = vadd.xlane.f32.xlu0 %v274
        %v276 = vpop.xlane.xlu0 %275
        %v277 = vsel %vm267, %v259, 0.0
        %278 = vadd.xlane.f32.xlu0 %v277
        %v279 = vpop.xlane.xlu0 %278
        %v280 = vsel %vm267, %v260, 0.0
        %281 = vadd.xlane.f32.xlu0 %v280
        %v282 = vpop.xlane.xlu0 %281
        %v283 = vsel %vm267, %v261, 0.0
        %284 = vadd.xlane.f32.xlu0 %v283
        %v285 = vpop.xlane.xlu0 %284
        %v286 = vsel %vm267, %v262, 0.0
        %287 = vadd.xlane.f32.xlu0 %v286
        %v288 = vpop.xlane.xlu0 %287
        %v289 = vsel %vm267, %v263, 0.0
        %290 = vadd.xlane.f32.xlu0 %v289
        %v291 = vpop.xlane.xlu0 %290
        %v292 = vsel %vm267, %v264, 0.0
        %293 = vadd.xlane.f32.xlu0 %v292
        %v294 = vpop.xlane.xlu0 %293
        %v295 = vsel %vm267, %v265, 0.0
        %296 = vadd.xlane.f32.xlu0 %v295
        %v297 = vpop.xlane.xlu0 %296
        %v298 = vsel %vm267, %v266, 0.0
        %299 = vadd.xlane.f32.xlu0 %v298
        %v300 = vpop.xlane.xlu0 %299
        %v301 = vlaneseq
        %v302 = vshrl.u32 %v301, 7
        %v303 = vadd.s32 %v302, 8
        %vm304 = vcmp.eq.s32.totalorder %v302, 0
        %vm305 = vcmp.eq.s32.totalorder %v303, 0
        %v306 = vsub.f32 0.0, %v270
        %v307 = vsub.f32 0.0, %v273
        %v308 = vsub.f32 0.0, %v276
        %v309 = vsub.f32 0.0, %v279
        %v310 = vsub.f32 0.0, %v282
        %v311 = vsub.f32 0.0, %v285
        %v312 = vsub.f32 0.0, %v288
        %v313 = vsub.f32 0.0, %v291
        %v314 = vsub.f32 0.0, %v294
        %v315 = vsub.f32 0.0, %v297
        %v316 = vsub.f32 0.0, %v300
        %v328 = vlaneseq
        %v329 = vand.u32 %v328, 127
        %v330 = vlaneseq
        %v331 = vshrl.u32 %v330, 7
        %v332 = vsub.s32 %v329, %v331
        %v333 = vrot.slane %v270, %v332
        %v334 = vlaneseq
        %v335 = vshrl.u32 %v334, 7
        %v336 = vsub.s32 %v329, %v335
        %v337 = vrot.slane %v273, %v336
        %v338 = vlaneseq
        %v339 = vshrl.u32 %v338, 7
        %v340 = vsub.s32 %v329, %v339
        %v341 = vrot.slane %v276, %v340
        %v342 = vlaneseq
        %v343 = vshrl.u32 %v342, 7
        %v344 = vsub.s32 %v329, %v343
        %v345 = vrot.slane %v279, %v344
        %v346 = vlaneseq
        %v347 = vshrl.u32 %v346, 7
        %v348 = vsub.s32 %v329, %v347
        %v349 = vrot.slane %v282, %v348
        %v350 = vlaneseq
        %v351 = vshrl.u32 %v350, 7
        %v352 = vsub.s32 %v329, %v351
        %v353 = vrot.slane %v285, %v352
        %v354 = vlaneseq
        %v355 = vshrl.u32 %v354, 7
        %v356 = vsub.s32 %v329, %v355
        %v357 = vrot.slane %v288, %v356
        %v358 = vlaneseq
        %v359 = vshrl.u32 %v358, 7
        %v360 = vsub.s32 %v329, %v359
        %v361 = vrot.slane %v291, %v360
        %v362 = vlaneseq
        %v363 = vshrl.u32 %v362, 7
        %v364 = vsub.s32 %v329, %v363
        %v365 = vrot.slane %v294, %v364
        %v366 = vlaneseq
        %v367 = vshrl.u32 %v366, 7
        %v368 = vsub.s32 %v329, %v367
        %v369 = vrot.slane %v297, %v368
        %v370 = vlaneseq
        %v371 = vshrl.u32 %v370, 7
        %v372 = vsub.s32 %v329, %v371
        %v373 = vrot.slane %v300, %v372
        %vm374 = vcmask 1041409
        %v375 = vsel %vm374, %v337, %v333
        %vm376 = vcmask 1042434
        %v377 = vsel %vm376, %v341, %v375
        %vm378 = vcmask 1043459
        %v379 = vsel %vm378, %v345, %v377
        %vm380 = vcmask 1044484
        %v381 = vsel %vm380, %v349, %v379
        %vm382 = vcmask 1045509
        %v383 = vsel %vm382, %v353, %v381
        %vm384 = vcmask 1046534
        %v385 = vsel %vm384, %v357, %v383
        %vm386 = vcmask 1047559
        %v387 = vsel %vm386, %v361, %v385
        %v388 = vsel %vm374, %v369, %v365
        %v389 = vsel %vm376, %v373, %v388
        %v403 = vlaneseq
        %v404 = vshrl.u32 %v403, 7
        %v405 = vsub.s32 %v329, %v404
        %v406 = vrot.slane %v306, %v405
        %v407 = vlaneseq
        %v408 = vshrl.u32 %v407, 7
        %v409 = vsub.s32 %v329, %v408
        %v410 = vrot.slane %v307, %v409
        %v411 = vlaneseq
        %v412 = vshrl.u32 %v411, 7
        %v413 = vsub.s32 %v329, %v412
        %v414 = vrot.slane %v308, %v413
        %v415 = vlaneseq
        %v416 = vshrl.u32 %v415, 7
        %v417 = vsub.s32 %v329, %v416
        %v418 = vrot.slane %v309, %v417
        %v419 = vlaneseq
        %v420 = vshrl.u32 %v419, 7
        %v421 = vsub.s32 %v329, %v420
        %v422 = vrot.slane %v310, %v421
        %v423 = vlaneseq
        %v424 = vshrl.u32 %v423, 7
        %v425 = vsub.s32 %v329, %v424
        %v426 = vrot.slane %v311, %v425
        %v427 = vlaneseq
        %v428 = vshrl.u32 %v427, 7
        %v429 = vsub.s32 %v329, %v428
        %v430 = vrot.slane %v312, %v429
        %v431 = vlaneseq
        %v432 = vshrl.u32 %v431, 7
        %v433 = vsub.s32 %v329, %v432
        %v434 = vrot.slane %v313, %v433
        %v435 = vlaneseq
        %v436 = vshrl.u32 %v435, 7
        %v437 = vsub.s32 %v329, %v436
        %v438 = vrot.slane %v314, %v437
        %v439 = vlaneseq
        %v440 = vshrl.u32 %v439, 7
        %v441 = vsub.s32 %v329, %v440
        %v442 = vrot.slane %v315, %v441
        %v443 = vlaneseq
        %v444 = vshrl.u32 %v443, 7
        %v445 = vsub.s32 %v329, %v444
        %v446 = vrot.slane %v316, %v445
        %v447 = vsel %vm374, %v410, %v406
        %v448 = vsel %vm376, %v414, %v447
        %v449 = vsel %vm378, %v418, %v448
        %v450 = vsel %vm380, %v422, %v449
        %v451 = vsel %vm382, %v426, %v450
        %v452 = vsel %vm384, %v430, %v451
        %v453 = vsel %vm386, %v434, %v452
        %v454 = vsel %vm374, %v442, %v438
        %v455 = vsel %vm376, %v446, %v454
        %v458 = vsel %vm304, %v387, %v453
        %v459 = vsel %vm305, %v389, %v455
        %s460 = sld [smem:[#allocation9]]
        %s461 = sld [smem:[#allocation2 + %s22]]
        %v462 = vmin.f32 %v458, 0.0
        %v463 = vmin.f32 %v459, 0.0
        %v464 = vand.u32 2147483647, %v458
        %v465 = vand.u32 2147483647, %v459
        %v466 = vsub.f32 0.0, %v464
        %v467 = vsub.f32 0.0, %v465
        %v468 = vmul.f32 %v466, 1.442695
        %v469 = vpow.pop %v468
        %v470 = vmul.f32 %v467, 1.442695
        %v471 = vpow.pop %v470
        %v472 = vadd.f32 %v469, 1.0
        %v473 = vlog2.pop %v472
        %v474 = vmul.f32 %v473, 0.6931472
        %v475 = vmul.f32 -0.5, %v469
        %v476 = vadd.f32 %v475, 1.0
        %v477 = vmul.f32 %v476, %v469
        %v478 = vand.u32 2147483647, %v469
        %vm479 = vcmp.lt.f32.partialorder %v478, 0.0004427343
        %v480 = vsel %vm479, %v477, %v474
        %v481 = vadd.f32 %v471, 1.0
        %v482 = vlog2.pop %v481
        %v483 = vmul.f32 %v482, 0.6931472
        %v484 = vmul.f32 -0.5, %v471
        %v485 = vadd.f32 %v484, 1.0
        %v486 = vmul.f32 %v485, %v471
        %v487 = vand.u32 2147483647, %v471
        %vm488 = vcmp.lt.f32.partialorder %v487, 0.0004427343
        %v489 = vsel %vm488, %v486, %v483
        %v490 = vsub.f32 %v462, %v480
        %v491 = vsub.f32 %v463, %v489
        %vm492 = vcmask 64512
        %v493 = vsel %vm492, %v490, 0.0
        %vm494 = vcmask 59392
        %v495 = vsel %vm494, %v491, 0.0
        %v496 = vadd.f32 %v493, %v495
        %497 = vadd.xlane.f32.xlu0 %v496
        %v498 = vpop.xlane.xlu0 %497
        %v499 = vrot.slane %v498, 4
        %v500 = vadd.f32 %v498, %v499
        %v501 = vrot.slane %v500, 2
        %v502 = vadd.f32 %v500, %v501
        %v503 = vrot.slane %v502, 1
        %v504 = vadd.f32 %v502, %v503
        %s505 = vtos %v504
        %s506 = smul.f32 %s461, %s505
        %s507 = sadd.f32 %s460, %s506
        %s508 = scalar_lea.smem [#allocation9], 0
        %509 = sst [smem:[%s508]] %s507
        // Predicated region
        $region49: #{tpu_custom_call.1} parent=31 // pred_check
          %p510 = pneg %p108
        $region50: #{tpu_custom_call.1} parent=31 // pred_check_branch
          %512 = sbr.rel (%p510) target = $region52
        $region51: #{tpu_custom_call.1} parent=31 // pred_region
          %s514 = ssub.s32 16, 16
          %515 = vsyncadd [#allocation5], %s514
          %518 = dma.smem_to_hbm [#allocation9], 16, %s3, [#allocation5]
        $region52: #{tpu_custom_call.1} parent=31 // pred_fallthru
          _
        // Predicated region
        $region53: #{tpu_custom_call.1} parent=31 // pred_check
          %p519 = pneg %p108
        $region54: #{tpu_custom_call.1} parent=31 // pred_check_branch
          %521 = sbr.rel (%p519) target = $region56
        $region55: #{tpu_custom_call.1} parent=31 // pred_region
          %522 = dma.done [#allocation5], 16
        $region56: #{tpu_custom_call.1} parent=31 // pred_fallthru
          _
        %523 = sfence
      $region32: #{tpu_custom_call.1} parent=5 // pred_fallthru
        _
      %p524 = scmp.le.s32.totalorder 2, %s17
      // Predicated region
      $region57: #{tpu_custom_call.1} parent=5 // pred_check
        %p525 = pneg %p524
      $region58: #{tpu_custom_call.1} parent=5 // pred_check_branch
        %527 = sbr.rel (%p525) target = $region60
      $region59: #{tpu_custom_call.1} parent=5 // pred_region
        %s528 = ssub.s32 %s17, 2
      $region60: #{tpu_custom_call.1} parent=5 // pred_fallthru
        _
    $region6: #{tpu_custom_call.1} parent=1 // loop_footer
      %s21 = sadd.s32 1, %s17
    $region7: #{tpu_custom_call.1} parent=1 // loop_footer_branch
      %16 = sbr.rel target = $region3
    $region8: #{tpu_custom_call.1} parent=1 // loop_exit
      _
    %529 = vsyncpa [#allocation3], 1
    %s530 = scalar_lea.sflag [#allocation3], 1
    %531 = vsyncpa %s530, 1
    %532 = vsyncpa [#allocation8], 1
    %s533 = scalar_lea.sflag [#allocation8], 1
    %534 = vsyncpa %s533, 1
    %535 = vsyncpa [#allocation4], 1
    %s536 = scalar_lea.sflag [#allocation4], 1
    %537 = vsyncpa %s536, 1
    %538 = vsyncpa [#allocation5], 1
    %s539 = scalar_lea.sflag [#allocation5], 1
    %540 = vsyncpa %s539, 1

</llo_original>
